<compile_context>
chip_gen: v7x
topology: tpu7x:2x2x1
jax: 0.10.0
libtpu: 0.0.40
codegen_flags: <defaults>
</compile_context>

<pallas_src>
import jax
import jax.numpy as jnp
from jax import lax
from jax.experimental import pallas as pl
from jax.experimental.pallas import tpu as pltpu


def _mlp_sigmoid_kernel(x_ref, w1_ref, b1_ref, w2d_ref, b2d_ref, o_ref):
    """fc1 -> ReLU -> 2-class softmax written as sigmoid of the logit difference.

    softmax([l0, l1]) == [1 - sigmoid(d), sigmoid(d)] with d = l1 - l0, and
    d = h @ (w2[1] - w2[0]) + (b2[1] - b2[0]).
    """
    x = x_ref[...]                                               # (TILE_B, 20) f32

    # fc1 + ReLU; w1 kept as (32, 20): contract dim 1 of x with dim 1 of w1 (MXU, f32 acc).
    h = lax.dot_general(
        x, w1_ref[...],
        dimension_numbers=(((1,), (1,)), ((), ())),
        preferred_element_type=jnp.float32,
    ) + b1_ref[...]                                              # (TILE_B, 32)
    h = jnp.maximum(h, 0.0)

    # Logit difference via a single lane reduction (VPU mul + XLU reduce), then sigmoid (EUP).
    d = jnp.sum(h * w2d_ref[...], axis=1, keepdims=True) + b2d_ref[...]   # (TILE_B, 1)
    p1 = 1.0 / (1.0 + jnp.exp(-d))                               # (TILE_B, 1)

    # Write [1 - p1, p1] into the 2-class output block with a single full-block store.
    col = lax.broadcasted_iota(jnp.int32, o_ref.shape, 1)        # (TILE_B, 2)
    p1b = jnp.broadcast_to(p1, o_ref.shape)
    o_ref[...] = jnp.where(col == 1, p1b, 1.0 - p1b).astype(o_ref.dtype)


def simple_model_forward(x, w1, b1, w2, b2, *, tile_b=2048):
    """x: (B, 20); w1: (32, 20); b1: (32,); w2: (2, 32); b2: (2,).

    Returns (B, 2) probabilities, matching softmax(relu(x @ w1.T + b1) @ w2.T + b2, dim=1).
    """
    B, in_f = x.shape
    hid = w1.shape[0]
    n_out = w2.shape[0]
    assert w1.shape == (hid, in_f) and b1.shape == (hid,)
    assert w2.shape == (n_out, hid) and b2.shape == (n_out,) and n_out == 2

    # Tiny wrapper-side glue (fused by XLA): 2-D biases for clean layout and the
    # 2-class weight/bias *differences* for the sigmoid epilogue. No transposes.
    x = x.astype(jnp.float32)
    w1 = w1.astype(jnp.float32)
    b1_2d = b1.reshape(1, hid).astype(jnp.float32)
    w2d = (w2[1] - w2[0]).reshape(1, hid).astype(jnp.float32)
    b2d = (b2[1] - b2[0]).reshape(1, 1).astype(jnp.float32)

    # Batch tile: multiple of 8 sublanes, capped at tile_b.  No batch padding:
    # boundary blocks cover a ragged last tile (OOB rows are per-row garbage whose
    # output writes are masked), avoiding an extra HBM copy of x.
    tile = max(8, (min(int(tile_b), pl.cdiv(B, 8) * 8) // 8) * 8)
    grid = (pl.cdiv(B, tile),)

    out = pl.pallas_call(
        _mlp_sigmoid_kernel,
        out_shape=jax.ShapeDtypeStruct((B, 2), jnp.float32),
        grid_spec=pltpu.PrefetchScalarGridSpec(
            num_scalar_prefetch=0,
            grid=grid,
            in_specs=[
                pl.BlockSpec((tile, in_f), lambda i: (i, 0)),   # x: streamed per batch tile
                pl.BlockSpec((hid, in_f), lambda i: (0, 0)),    # w1: resident across steps
                pl.BlockSpec((1, hid), lambda i: (0, 0)),       # b1: resident
                pl.BlockSpec((1, hid), lambda i: (0, 0)),       # w2[1]-w2[0]: resident
                pl.BlockSpec((1, 1), lambda i: (0, 0)),         # b2[1]-b2[0]: resident
            ],
            out_specs=pl.BlockSpec((tile, 2), lambda i: (i, 0)),
        ),
        compiler_params=pltpu.CompilerParams(
            dimension_semantics=("parallel",),
        ),
    )(x, w1, b1_2d, w2d, b2d)
    return out


if __name__ == "__main__":
    key = jax.random.PRNGKey(0)
    k_x, k_w1, k_b1, k_w2, k_b2 = jax.random.split(key, 5)

    B, IN, HID, OUT = 8, 20, 32, 2

    x = jax.random.normal(k_x, (B, IN), dtype=jnp.float32)
    bound1 = 1.0 / (IN ** 0.5)
    w1 = jax.random.uniform(k_w1, (HID, IN), minval=-bound1, maxval=bound1, dtype=jnp.float32)
    b1 = jax.random.uniform(k_b1, (HID,), minval=-bound1, maxval=bound1, dtype=jnp.float32)
    bound2 = 1.0 / (HID ** 0.5)
    w2 = jax.random.uniform(k_w2, (OUT, HID), minval=-bound2, maxval=bound2, dtype=jnp.float32)
    b2 = jax.random.uniform(k_b2, (OUT,), minval=-bound2, maxval=bound2, dtype=jnp.float32)

    def ref_fn(xr):
        return jax.nn.softmax(jnp.maximum(xr @ w1.T + b1, 0.0) @ w2.T + b2, axis=1)

    # Main check at B=8 (single grid step).
    out = jax.block_until_ready(simple_model_forward(x, w1, b1, w2, b2))
    ref = ref_fn(x)
    assert out.shape == (B, OUT)
    assert jnp.allclose(out, ref, atol=1e-5, rtol=1e-5)
    assert jnp.allclose(jnp.sum(out, axis=1), 1.0, atol=1e-5)

    # Ragged batch + multi-step grid (exercises boundary-block masking & the pipeline).
    x13 = jax.random.normal(jax.random.PRNGKey(1), (13, IN), dtype=jnp.float32)
    out13 = jax.block_until_ready(simple_model_forward(x13, w1, b1, w2, b2, tile_b=8))
    assert out13.shape == (13, OUT)
    assert jnp.allclose(out13, ref_fn(x13), atol=1e-5, rtol=1e-5)

    print("KERNEL_OK")
</pallas_src>

<mosaic_0001>
module attributes {stable_mosaic.version = 11 : i64} {
  func.func @_mlp_sigmoid_kernel(%arg0: i32, %arg1: memref<8x20xf32, #tpu.memory_space<vmem>>, %arg2: memref<32x20xf32, #tpu.memory_space<vmem>>, %arg3: memref<1x32xf32, #tpu.memory_space<vmem>>, %arg4: memref<1x32xf32, #tpu.memory_space<vmem>>, %arg5: memref<1x1xf32, #tpu.memory_space<vmem>>, %arg6: memref<8x2xf32, #tpu.memory_space<vmem>>) attributes {dimension_semantics = [#tpu.dimension_semantics<parallel>], iteration_bounds = array<i64: 1>, scalar_prefetch = 0 : i64, scratch_operands = 0 : i64, tpu.core_type = #tpu.core_type<tc>, window_params = [{transform_indices = @transform_0, window_bounds = array<i64: 8, 20>}, {pipeline_mode = #tpu.pipeline_mode<synchronous>, transform_indices = @transform_1, window_bounds = array<i64: 32, 20>}, {pipeline_mode = #tpu.pipeline_mode<synchronous>, transform_indices = @transform_2, window_bounds = array<i64: 1, 32>}, {pipeline_mode = #tpu.pipeline_mode<synchronous>, transform_indices = @transform_3, window_bounds = array<i64: 1, 32>}, {pipeline_mode = #tpu.pipeline_mode<synchronous>, transform_indices = @transform_4, window_bounds = array<i64: 1, 1>}, {transform_indices = @transform_5, window_bounds = array<i64: 8, 2>}]} {
    %c0 = arith.constant 0 : index
    %c0_0 = arith.constant 0 : index
    %0 = vector.load %arg1[%c0, %c0_0] : memref<8x20xf32, #tpu.memory_space<vmem>>, vector<8x20xf32>
    %c0_1 = arith.constant 0 : index
    %c0_2 = arith.constant 0 : index
    %1 = vector.load %arg2[%c0_1, %c0_2] : memref<32x20xf32, #tpu.memory_space<vmem>>, vector<32x20xf32>
    %cst = arith.constant dense<0.000000e+00> : vector<8x32xf32>
    %2 = tpu.matmul %0, %1, %cst {dimension_numbers = #tpu.dot_dimension_numbers<[1], [1], [0], [0], [0, 0, 1, 0], [], []>} : vector<8x20xf32>, vector<32x20xf32>, vector<8x32xf32> -> vector<8x32xf32>
    %c0_3 = arith.constant 0 : index
    %c0_4 = arith.constant 0 : index
    %3 = vector.load %arg3[%c0_3, %c0_4] : memref<1x32xf32, #tpu.memory_space<vmem>>, vector<1x32xf32>
    %4 = vector.broadcast %3 : vector<1x32xf32> to vector<8x32xf32>
    %5 = arith.addf %2, %4 : vector<8x32xf32>
    %cst_5 = arith.constant 0.000000e+00 : f32
    %6 = vector.broadcast %cst_5 : f32 to vector<8x32xf32>
    %7 = arith.maximumf %5, %6 : vector<8x32xf32>
    %c0_6 = arith.constant 0 : index
    %c0_7 = arith.constant 0 : index
    %8 = vector.load %arg4[%c0_6, %c0_7] : memref<1x32xf32, #tpu.memory_space<vmem>>, vector<1x32xf32>
    %9 = vector.broadcast %8 : vector<1x32xf32> to vector<8x32xf32>
    %10 = arith.mulf %7, %9 : vector<8x32xf32>
    %cst_8 = arith.constant dense<0.000000e+00> : vector<8xf32>
    %11 = vector.multi_reduction <add>, %10, %cst_8 [1] : vector<8x32xf32> to vector<8xf32>
    %12 = vector.shape_cast %11 : vector<8xf32> to vector<8x1xf32>
    %c0_9 = arith.constant 0 : index
    %c0_10 = arith.constant 0 : index
    %13 = vector.load %arg5[%c0_9, %c0_10] : memref<1x1xf32, #tpu.memory_space<vmem>>, vector<1x1xf32>
    %14 = vector.broadcast %13 : vector<1x1xf32> to vector<8x1xf32>
    %15 = arith.addf %12, %14 : vector<8x1xf32>
    %cst_11 = arith.constant 0.000000e+00 : f32
    %16 = vector.broadcast %cst_11 : f32 to vector<8x1xf32>
    %17 = arith.subf %16, %15 : vector<8x1xf32>
    %18 = math.exp %17 : vector<8x1xf32>
    %cst_12 = arith.constant 1.000000e+00 : f32
    %19 = vector.broadcast %cst_12 : f32 to vector<8x1xf32>
    %20 = arith.addf %19, %18 : vector<8x1xf32>
    %cst_13 = arith.constant 1.000000e+00 : f32
    %21 = vector.broadcast %cst_13 : f32 to vector<8x1xf32>
    %22 = arith.divf %21, %20 : vector<8x1xf32>
    %23 = tpu.iota {dimensions = array<i32: 1>} : vector<8x2xi32>
    %24 = vector.shape_cast %22 : vector<8x1xf32> to vector<8x1xf32>
    %25 = vector.broadcast %24 : vector<8x1xf32> to vector<8x2xf32>
    %c1_i32 = arith.constant 1 : i32
    %26 = vector.broadcast %c1_i32 : i32 to vector<8x2xi32>
    %27 = arith.cmpi eq, %23, %26 : vector<8x2xi32>
    %cst_14 = arith.constant 1.000000e+00 : f32
    %28 = vector.broadcast %cst_14 : f32 to vector<8x2xf32>
    %29 = arith.subf %28, %25 : vector<8x2xf32>
    %30 = arith.select %27, %25, %29 : vector<8x2xi1>, vector<8x2xf32>
    %c0_15 = arith.constant 0 : index
    %c0_16 = arith.constant 0 : index
    %31 = vector.load %arg6[%c0_15, %c0_16] : memref<8x2xf32, #tpu.memory_space<vmem>>, vector<8x2xf32>
    tpu.vector_store %arg6[%c0_15, %c0_16], %30 {strides = array<i32>} : memref<8x2xf32, #tpu.memory_space<vmem>>, vector<8x2xf32>,
    return
  }
  func.func @transform_0(%arg0: i32) -> (i32, i32) {
    %c0_i32 = arith.constant 0 : i32
    %c0_i32_0 = arith.constant 0 : i32
    return %arg0, %c0_i32 : i32, i32
  }
  func.func @transform_1(%arg0: i32) -> (i32, i32) {
    %c0_i32 = arith.constant 0 : i32
    %c0_i32_0 = arith.constant 0 : i32
    %c0_i32_1 = arith.constant 0 : i32
    return %c0_i32, %c0_i32_0 : i32, i32
  }
  func.func @transform_2(%arg0: i32) -> (i32, i32) {
    %c0_i32 = arith.constant 0 : i32
    %c0_i32_0 = arith.constant 0 : i32
    %c0_i32_1 = arith.constant 0 : i32
    return %c0_i32, %c0_i32_0 : i32, i32
  }
  func.func @transform_3(%arg0: i32) -> (i32, i32) {
    %c0_i32 = arith.constant 0 : i32
    %c0_i32_0 = arith.constant 0 : i32
    %c0_i32_1 = arith.constant 0 : i32
    return %c0_i32, %c0_i32_0 : i32, i32
  }
  func.func @transform_4(%arg0: i32) -> (i32, i32) {
    %c0_i32 = arith.constant 0 : i32
    %c0_i32_0 = arith.constant 0 : i32
    %c0_i32_1 = arith.constant 0 : i32
    return %c0_i32, %c0_i32_0 : i32, i32
  }
  func.func @transform_5(%arg0: i32) -> (i32, i32) {
    %c0_i32 = arith.constant 0 : i32
    %c0_i32_0 = arith.constant 0 : i32
    return %arg0, %c0_i32 : i32, i32
  }
}

</mosaic_0001>

<llo_original>
// kernel: tpu_custom_call.1
$region0: #{tpu_custom_call.1}
  #allocation0 [shape = 'u32[]', space=smem, size = 0x4, offset = 0x4, fixed_abs, tag = 'smem constant byte address 0x4 - core index']
  #allocation1 [shape = 'u32[144,128]{1,0:T(1,128)}', space=vmem, size = 0x12000, scoped, tag = 'internal scratch']
  #allocation2 [shape = 'f32[1,1]{1,0:T(1,128)S(1)}', space=vmem, size = 0x200, scoped, tag = 'scoped memory for tpu_custom_call.1']
  %s0 = inlined_call_operand.vmem [shape: f32[8,20], index: 0, kind: input, shape index: {}]
  %s1 = inlined_call_operand.vmem [shape: f32[32,20], index: 1, kind: input, shape index: {}]
  %s2 = inlined_call_operand.vmem [shape: f32[1,32], index: 2, kind: input, shape index: {}]
  %s3 = inlined_call_operand.vmem [shape: f32[1,32], index: 3, kind: input, shape index: {}]
  %s4 = inlined_call_operand.<no memory space> [shape: f32[1,1], index: 4, kind: input, shape index: {}]
  %s5 = inlined_call_operand.vmem [shape: f32[8,2], index: 5, kind: output, shape index: {}]
  %s6 = sld [smem:[#allocation0]]
  $region30: #{tpu_custom_call.1} parent=0
    _
  %s8 = ssub.s32 1, %s6
  %s9 = scalar_select 0, %s8, %s6
  %v10 = vstv %s4
  %11 = vst [vmem:[#allocation2] sm:$0x1] %v10
  // Predicated region
  $region2: #{tpu_custom_call.1} parent=0 // pred_check
    _
  $region3: #{tpu_custom_call.1} parent=0 // pred_check_branch
    %13 = sbr.rel (0) target = $region5
  $region4: #{tpu_custom_call.1} parent=0 // pred_region
    _
  $region5: #{tpu_custom_call.1} parent=0 // pred_fallthru
    _
  // Predicated region
  $region6: #{tpu_custom_call.1} parent=0 // pred_check
    _
  $region7: #{tpu_custom_call.1} parent=0 // pred_check_branch
    %15 = sbr.rel (0) target = $region9
  $region8: #{tpu_custom_call.1} parent=0 // pred_region
    _
  $region9: #{tpu_custom_call.1} parent=0 // pred_fallthru
    _
  // Predicated region
  $region10: #{tpu_custom_call.1} parent=0 // pred_check
    _
  $region11: #{tpu_custom_call.1} parent=0 // pred_check_branch
    %17 = sbr.rel (0) target = $region13
  $region12: #{tpu_custom_call.1} parent=0 // pred_region
    _
  $region13: #{tpu_custom_call.1} parent=0 // pred_fallthru
    _
  // Predicated region
  $region14: #{tpu_custom_call.1} parent=0 // pred_check
    _
  $region15: #{tpu_custom_call.1} parent=0 // pred_check_branch
    %19 = sbr.rel (0) target = $region17
  $region16: #{tpu_custom_call.1} parent=0 // pred_region
    _
  $region17: #{tpu_custom_call.1} parent=0 // pred_fallthru
    _
  // Predicated region
  $region18: #{tpu_custom_call.1} parent=0 // pred_check
    _
  $region19: #{tpu_custom_call.1} parent=0 // pred_check_branch
    %21 = sbr.rel (0) target = $region21
  $region20: #{tpu_custom_call.1} parent=0 // pred_region
    _
  $region21: #{tpu_custom_call.1} parent=0 // pred_fallthru
    _
  %v22 = vld [vmem:[%s0] sm:$0xff]
  %v23 = vld [vmem:[%s1] sm:$0xff]
  %v24 = vld [vmem:[%s1 + $0x8] sm:$0xff]
  %v25 = vld [vmem:[%s1 + $0x10] sm:$0xff]
  %v26 = vld [vmem:[%s1 + $0x18] sm:$0xff]
  %v27 = vld [vmem:[%s2] sm:$0x1]
  %v29 = vlaneseq
  %v30 = vshrl.u32 %v29, 7
  %v31 = vsub.s32 0, %v30
  %v32 = vrot.slane %v27, %v31
  %vm34 = vcmask 162816
  %v36 = vsel %vm34, %v22, 0
  %v39 = vsel %vm34, %v23, 0
  %v42 = vsel %vm34, %v24, 0
  %v45 = vsel %vm34, %v25, 0
  %v48 = vsel %vm34, %v26, 0
  %50 = vmatprep.subr.mxu0 0.0
  %51 = vmatpush1.xpose.msra.mxu0 %v39
  %52 = vmatprep.subr.mxu0 0.0
  %53 = vmatpush1.xpose.msra.mxu0 %v42
  %54 = vmatprep.subr.mxu0 0.0
  %55 = vmatpush1.xpose.msra.mxu0 %v45
  %56 = vmatprep.subr.mxu0 0.0
  %57 = vmatpush1.xpose.msra.mxu0 %v48
  %58 = vmatprep.subr.mxu0 0.0
  %59 = vmatpush1.xpose.msra.mxu0 0.0
  %60 = vmatprep.subr.mxu0 0.0
  %61 = vmatpush1.xpose.msra.mxu0 0.0
  %62 = vmatprep.subr.mxu0 0.0
  %63 = vmatpush1.xpose.msra.mxu0 0.0
  %64 = vmatprep.subr.mxu0 0.0
  %65 = vmatpush1.xpose.msra.mxu0 0.0
  %66 = vmatprep.subr.mxu0 0.0
  %67 = vmatpush1.xpose.msra.mxu0 0.0
  %68 = vmatprep.subr.mxu0 0.0
  %69 = vmatpush1.xpose.msra.mxu0 0.0
  %70 = vmatprep.subr.mxu0 0.0
  %71 = vmatpush1.xpose.msra.mxu0 0.0
  %72 = vmatprep.subr.mxu0 0.0
  %73 = vmatpush1.xpose.msra.mxu0 0.0
  %74 = vmatprep.subr.mxu0 0.0
  %75 = vmatpush1.xpose.msra.mxu0 0.0
  %76 = vmatprep.subr.mxu0 0.0
  %77 = vmatpush1.xpose.msra.mxu0 0.0
  %78 = vmatprep.subr.mxu0 0.0
  %79 = vmatpush1.xpose.msra.mxu0 0.0
  %80 = vmatprep.subr.mxu0 0.0
  %81 = vmatpush1.xpose.msra.mxu0 0.0
  %82 = vmatprep.subr.mxu0 0.0
  %83 = vmatpush1.xpose.msra.mxu0 0.0
  %84 = vmatprep.subr.mxu0 0.0
  %85 = vmatpush1.xpose.msra.mxu0 0.0
  %86 = vmatprep.subr.mxu0 0.0
  %87 = vmatpush1.xpose.msra.mxu0 0.0
  %88 = vmatprep.subr.mxu0 0.0
  %89 = vmatpush1.xpose.msra.mxu0 0.0
  %90 = vmatprep.subr.mxu0 0.0
  %91 = vmatpush1.xpose.msra.mxu0 0.0
  %92 = vmatprep.subr.mxu0 0.0
  %93 = vmatpush1.xpose.msra.mxu0 0.0
  %94 = vmatprep.subr.mxu0 0.0
  %95 = vmatpush1.xpose.msra.mxu0 0.0
  %96 = vmatprep.subr.mxu0 0.0
  %97 = vmatpush1.xpose.msra.mxu0 0.0
  %98 = vmatprep.subr.mxu0 0.0
  %99 = vmatpush1.xpose.msra.mxu0 0.0
  %100 = vmatprep.subr.mxu0 0.0
  %101 = vmatpush1.xpose.msra.mxu0 0.0
  %102 = vmatprep.subr.mxu0 0.0
  %103 = vmatpush1.xpose.msra.mxu0 0.0
  %104 = vmatprep.subr.mxu0 0.0
  %105 = vmatpush1.xpose.msra.mxu0 0.0
  %106 = vmatprep.subr.mxu0 0.0
  %107 = vmatpush1.xpose.msra.mxu0 0.0
  %108 = vmatprep.subr.mxu0 0.0
  %109 = vmatpush1.xpose.msra.mxu0 0.0
  %110 = vmatprep.subr.mxu0 0.0
  %111 = vmatpush1.xpose.msra.mxu0 0.0
  %112 = vmatprep.subr.mxu0 0.0
  %113 = vmatpush1.xpose.msra.mxu0 0.0
  %114 = vmatprep.mubr.f32.mxu0 0.0
  %115 = vmatmul.mubr.f32.gmra.mrb[0].mxu0 %v36
  %v116 = vpop.f32.mrb[0].mxu0
  %v117 = vadd.f32 %v32, %v116
  %v118 = vpop.f32.mrb[0].mxu0
  %119 = vdwg.mxu0
  %v120 = vmax.f32 %v117, 0.0
  %v121 = vld [vmem:[%s3] sm:$0x1]
  %v123 = vlaneseq
  %v124 = vshrl.u32 %v123, 7
  %v125 = vsub.s32 0, %v124
  %v126 = vrot.slane %v121, %v125
  %v128 = vmul.f32 %v120, %v126
  %vm129 = vcmask 261120
  %v130 = vsel %vm129, %v128, 0.0
  %131 = vadd.xlane.f32.xlu0 %v130
  %v132 = vpop.xlane.xlu0 %131
  %v133 = vld [vmem:[#allocation2] sm:$0x1]
  %v135 = vlaneseq
  %v136 = vshrl.u32 %v135, 7
  %v137 = vsub.s32 0, %v136
  %v138 = vrot.slane %v133, %v137
  %v140 = vadd.f32 %v132, %v138
  %v141 = vsub.f32 0.0, %v140
  %v142 = vmul.f32 %v141, 1.442695
  %v143 = vpow.pop %v142
  %v144 = vadd.f32 %v143, 1.0
  %v145 = vrcp.pop %v144
  %v146 = vmul.f32 1.0, %v145
  %v147 = vlaneseq
  %v148 = vand.u32 %v147, 127
  %150 = vset.pattern.permute.xlu0 0
  %151 = vperm.xlu0 %150, %v146
  %v152 = vpop.permute.xlu0 %151
  %vm154 = vcmp.eq.s32.totalorder %v148, 1
  %v155 = vsub.f32 1.0, %v152
  %v156 = vsel %vm154, %v152, %v155
  %vm157 = vcmask 15360
  %158 = vst.msk [vmem:[%s5] sm:$0xff] %vm157, %v156
  // Predicated region
  $region22: #{tpu_custom_call.1} parent=0 // pred_check
    _
  $region23: #{tpu_custom_call.1} parent=0 // pred_check_branch
    %160 = sbr.rel (0) target = $region25
  $region24: #{tpu_custom_call.1} parent=0 // pred_region
    _
  $region25: #{tpu_custom_call.1} parent=0 // pred_fallthru
    _
  // Predicated region
  $region26: #{tpu_custom_call.1} parent=0 // pred_check
    _
  $region27: #{tpu_custom_call.1} parent=0 // pred_check_branch
    %162 = sbr.rel (0) target = $region29
  $region28: #{tpu_custom_call.1} parent=0 // pred_region
    _
  $region29: #{tpu_custom_call.1} parent=0 // pred_fallthru
    _

</llo_original>
